<compile_context>
chip_gen: v7x
topology: tpu7x:2x2x1
jax: 0.10.0
libtpu: 0.0.40
codegen_flags: <defaults>
</compile_context>

<pallas_src>
import jax
import jax.numpy as jnp
from jax.experimental import pallas as pl
from jax.experimental.pallas import tpu as pltpu

EPS = 1e-5


def bn_add_kernel(x_ref, y_ref, w_ref, b_ref, o_ref):
    # x_ref, y_ref, o_ref: (N, C, HW)   w_ref, b_ref: (1, C, 1)
    x = x_ref[...]
    inv_n = jnp.float32(1.0 / (x.shape[0] * x.shape[2]))

    # One streaming pass over x for the per-channel statistics.
    s1 = jnp.sum(x, axis=(0, 2), keepdims=True)        # (1, C, 1)
    s2 = jnp.sum(x * x, axis=(0, 2), keepdims=True)    # (1, C, 1)
    mean = s1 * inv_n
    var = s2 * inv_n - mean * mean                     # biased (training-mode) variance
    inv_std = jax.lax.rsqrt(var + EPS)

    # Fold per-channel constants once (single broadcast each).
    scale = w_ref[...] * inv_std                       # (1, C, 1)
    shift = b_ref[...] - mean * scale                  # (1, C, 1)

    o_ref[...] = (y_ref[...] + x * scale + shift).astype(o_ref.dtype)


def batchnorm_add(x28, x43, weight, bias):
    """Returns x43 + BatchNorm2d(x28) using batch statistics (training mode)."""
    N, C, H, W = x28.shape
    HW = H * W

    # Free views, no transpose / data movement.
    xr = x28.reshape(N, C, HW)
    yr = x43.reshape(N, C, HW)
    w3 = weight.reshape(1, C, 1).astype(jnp.float32)
    b3 = bias.reshape(1, C, 1).astype(jnp.float32)

    out = pl.pallas_call(
        bn_add_kernel,
        out_shape=jax.ShapeDtypeStruct((N, C, HW), x43.dtype),
        in_specs=[
            pl.BlockSpec((N, C, HW), lambda: (0, 0, 0)),
            pl.BlockSpec((N, C, HW), lambda: (0, 0, 0)),
            pl.BlockSpec((1, C, 1), lambda: (0, 0, 0)),
            pl.BlockSpec((1, C, 1), lambda: (0, 0, 0)),
        ],
        out_specs=pl.BlockSpec((N, C, HW), lambda: (0, 0, 0)),
        input_output_aliases={1: 0},  # reuse the residual's buffer for the result
        cost_estimate=pl.CostEstimate(
            flops=7 * N * C * HW,
            transcendentals=C,
            bytes_accessed=3 * N * C * HW * 4 + 2 * C * 4,
        ),
        compiler_params=pltpu.CompilerParams(vmem_limit_bytes=32 * 1024 * 1024),
    )(xr, yr, w3, b3)

    return out.reshape(N, C, H, W)


def reference(x28, x43, weight, bias):
    mean = jnp.mean(x28, axis=(0, 2, 3), keepdims=True)
    var = jnp.mean((x28 - mean) ** 2, axis=(0, 2, 3), keepdims=True)
    xhat = (x28 - mean) * jax.lax.rsqrt(var + EPS)
    x29 = xhat * weight.reshape(1, -1, 1, 1) + bias.reshape(1, -1, 1, 1)
    return x43 + x29


if __name__ == "__main__":
    key = jax.random.PRNGKey(0)
    k1, k2 = jax.random.split(key)

    N, C, H, W = 1, 24, 56, 56
    x28 = jax.random.normal(k1, (N, C, H, W), dtype=jnp.float32)
    x43 = jax.random.normal(k2, (N, C, H, W), dtype=jnp.float32)

    # BatchNorm2d default parameter init (deterministic): weight = 1, bias = 0
    weight = jnp.ones((C,), dtype=jnp.float32)
    bias = jnp.zeros((C,), dtype=jnp.float32)
    # TODO(synk): running_mean/running_var momentum update is a training side
    # effect that does not affect the forward output; not materialized here.

    fn = jax.jit(batchnorm_add)
    out = fn(x28, x43, weight, bias)
    jax.block_until_ready(out)

    ref = reference(x28, x43, weight, bias)
    assert out.shape == (N, C, H, W)
    assert jnp.allclose(out, ref, atol=1e-4, rtol=1e-4)

    print("KERNEL_OK")
</pallas_src>

<mosaic_0001>
module attributes {stable_mosaic.version = 11 : i64} {
  func.func @bn_add_kernel(%arg0: memref<1x24x3136xf32, #tpu.memory_space<vmem>>, %arg1: memref<1x24x3136xf32, #tpu.memory_space<vmem>>, %arg2: memref<1x24x1xf32, #tpu.memory_space<vmem>>, %arg3: memref<1x24x1xf32, #tpu.memory_space<vmem>>, %arg4: memref<1x24x3136xf32, #tpu.memory_space<vmem>>) attributes {dimension_semantics = [], scalar_prefetch = 0 : i64, scratch_operands = 0 : i64, tpu.core_type = #tpu.core_type<tc>} {
    %c0 = arith.constant 0 : index
    %c0_0 = arith.constant 0 : index
    %c0_1 = arith.constant 0 : index
    %0 = vector.load %arg0[%c0, %c0_0, %c0_1] : memref<1x24x3136xf32, #tpu.memory_space<vmem>>, vector<1x24x3136xf32>
    %cst = arith.constant dense<0.000000e+00> : vector<24xf32>
    %1 = vector.multi_reduction <add>, %0, %cst [0, 2] : vector<1x24x3136xf32> to vector<24xf32>
    %2 = vector.shape_cast %1 : vector<24xf32> to vector<1x24x1xf32>
    %3 = arith.mulf %0, %0 : vector<1x24x3136xf32>
    %cst_2 = arith.constant dense<0.000000e+00> : vector<24xf32>
    %4 = vector.multi_reduction <add>, %3, %cst_2 [0, 2] : vector<1x24x3136xf32> to vector<24xf32>
    %5 = vector.shape_cast %4 : vector<24xf32> to vector<1x24x1xf32>
    %cst_3 = arith.constant 3.18877544E-4 : f32
    %6 = vector.broadcast %cst_3 : f32 to vector<1x24x1xf32>
    %7 = arith.mulf %2, %6 : vector<1x24x1xf32>
    %cst_4 = arith.constant 3.18877544E-4 : f32
    %8 = vector.broadcast %cst_4 : f32 to vector<1x24x1xf32>
    %9 = arith.mulf %5, %8 : vector<1x24x1xf32>
    %10 = arith.mulf %7, %7 : vector<1x24x1xf32>
    %11 = arith.subf %9, %10 : vector<1x24x1xf32>
    %cst_5 = arith.constant 9.99999974E-6 : f32
    %12 = vector.broadcast %cst_5 : f32 to vector<1x24x1xf32>
    %13 = arith.addf %11, %12 : vector<1x24x1xf32>
    %14 = math.rsqrt %13 : vector<1x24x1xf32>
    %c0_6 = arith.constant 0 : index
    %c0_7 = arith.constant 0 : index
    %c0_8 = arith.constant 0 : index
    %15 = vector.load %arg2[%c0_6, %c0_7, %c0_8] : memref<1x24x1xf32, #tpu.memory_space<vmem>>, vector<1x24x1xf32>
    %16 = arith.mulf %15, %14 : vector<1x24x1xf32>
    %c0_9 = arith.constant 0 : index
    %c0_10 = arith.constant 0 : index
    %c0_11 = arith.constant 0 : index
    %17 = vector.load %arg3[%c0_9, %c0_10, %c0_11] : memref<1x24x1xf32, #tpu.memory_space<vmem>>, vector<1x24x1xf32>
    %18 = arith.mulf %7, %16 : vector<1x24x1xf32>
    %19 = arith.subf %17, %18 : vector<1x24x1xf32>
    %c0_12 = arith.constant 0 : index
    %c0_13 = arith.constant 0 : index
    %c0_14 = arith.constant 0 : index
    %20 = vector.load %arg1[%c0_12, %c0_13, %c0_14] : memref<1x24x3136xf32, #tpu.memory_space<vmem>>, vector<1x24x3136xf32>
    %21 = vector.broadcast %16 : vector<1x24x1xf32> to vector<1x24x3136xf32>
    %22 = arith.mulf %0, %21 : vector<1x24x3136xf32>
    %23 = arith.addf %20, %22 : vector<1x24x3136xf32>
    %24 = vector.broadcast %19 : vector<1x24x1xf32> to vector<1x24x3136xf32>
    %25 = arith.addf %23, %24 : vector<1x24x3136xf32>
    %c0_15 = arith.constant 0 : index
    %c0_16 = arith.constant 0 : index
    %c0_17 = arith.constant 0 : index
    %26 = vector.load %arg4[%c0_15, %c0_16, %c0_17] : memref<1x24x3136xf32, #tpu.memory_space<vmem>>, vector<1x24x3136xf32>
    tpu.vector_store %arg4[%c0_15, %c0_16, %c0_17], %25 {strides = array<i32>} : memref<1x24x3136xf32, #tpu.memory_space<vmem>>, vector<1x24x3136xf32>,
    return
  }
}

</mosaic_0001>

<llo_original>
// kernel: batchnorm_add.1
$region0: #{batchnorm_add.1}
  #allocation0 [shape = 'u32[]', space=smem, size = 0x4, offset = 0x4, fixed_abs, tag = 'smem constant byte address 0x4 - core index']
  #allocation1 [shape = 'u32[144,128]{1,0:T(1,128)}', space=vmem, size = 0x12000, scoped, tag = 'internal scratch']
  %s0 = inlined_call_operand.vmem [shape: f32[1,24,3136], index: 0, kind: input, shape index: {}]
  %s1 = inlined_call_operand.vmem [shape: f32[1,24,3136], index: 1, kind: input, shape index: {}, may-alias: {1,4}]
  %s2 = inlined_call_operand.vmem [shape: f32[1,24,1], index: 2, kind: input, shape index: {}]
  %s3 = inlined_call_operand.vmem [shape: f32[1,24,1], index: 3, kind: input, shape index: {}]
  %s4 = inlined_call_operand.vmem [shape: f32[1,24,3136], index: 4, kind: output, shape index: {}, may-alias: {1,4}]
  %s5 = sld [smem:[#allocation0]]
  $region26: #{batchnorm_add.1} parent=0
    _
  %s7 = ssub.s32 1, %s5
  %s8 = scalar_select 0, %s7, %s5
  // Predicated region
  $region2: #{batchnorm_add.1} parent=0 // pred_check
    _
  $region3: #{batchnorm_add.1} parent=0 // pred_check_branch
    %10 = sbr.rel (0) target = $region5
  $region4: #{batchnorm_add.1} parent=0 // pred_region
    _
  $region5: #{batchnorm_add.1} parent=0 // pred_fallthru
    _
  // Predicated region
  $region6: #{batchnorm_add.1} parent=0 // pred_check
    _
  $region7: #{batchnorm_add.1} parent=0 // pred_check_branch
    %12 = sbr.rel (0) target = $region9
  $region8: #{batchnorm_add.1} parent=0 // pred_region
    _
  $region9: #{batchnorm_add.1} parent=0 // pred_fallthru
    _
  // Predicated region
  $region10: #{batchnorm_add.1} parent=0 // pred_check
    _
  $region11: #{batchnorm_add.1} parent=0 // pred_check_branch
    %14 = sbr.rel (0) target = $region13
  $region12: #{batchnorm_add.1} parent=0 // pred_region
    _
  $region13: #{batchnorm_add.1} parent=0 // pred_fallthru
    _
  // Predicated region
  $region14: #{batchnorm_add.1} parent=0 // pred_check
    _
  $region15: #{batchnorm_add.1} parent=0 // pred_check_branch
    %16 = sbr.rel (0) target = $region17
  $region16: #{batchnorm_add.1} parent=0 // pred_region
    _
  $region17: #{batchnorm_add.1} parent=0 // pred_fallthru
    _
  %v17 = vld [vmem:[%s0] sm:$0xff]
  %v18 = vld [vmem:[%s0 + $0x8] sm:$0xff]
  %v19 = vld [vmem:[%s0 + $0x10] sm:$0xff]
  %v20 = vld [vmem:[%s0 + $0x18] sm:$0xff]
  %v21 = vld [vmem:[%s0 + $0x20] sm:$0xff]
  %v22 = vld [vmem:[%s0 + $0x28] sm:$0xff]
  %v23 = vld [vmem:[%s0 + $0x30] sm:$0xff]
  %v24 = vld [vmem:[%s0 + $0x38] sm:$0xff]
  %v25 = vld [vmem:[%s0 + $0x40] sm:$0xff]
  %v26 = vld [vmem:[%s0 + $0x48] sm:$0xff]
  %v27 = vld [vmem:[%s0 + $0x50] sm:$0xff]
  %v28 = vld [vmem:[%s0 + $0x58] sm:$0xff]
  %v29 = vld [vmem:[%s0 + $0x60] sm:$0xff]
  %v30 = vld [vmem:[%s0 + $0x68] sm:$0xff]
  %v31 = vld [vmem:[%s0 + $0x70] sm:$0xff]
  %v32 = vld [vmem:[%s0 + $0x78] sm:$0xff]
  %v33 = vld [vmem:[%s0 + $0x80] sm:$0xff]
  %v34 = vld [vmem:[%s0 + $0x88] sm:$0xff]
  %v35 = vld [vmem:[%s0 + $0x90] sm:$0xff]
  %v36 = vld [vmem:[%s0 + $0x98] sm:$0xff]
  %v37 = vld [vmem:[%s0 + $0xa0] sm:$0xff]
  %v38 = vld [vmem:[%s0 + $0xa8] sm:$0xff]
  %v39 = vld [vmem:[%s0 + $0xb0] sm:$0xff]
  %v40 = vld [vmem:[%s0 + $0xb8] sm:$0xff]
  %v41 = vld [vmem:[%s0 + $0xc0] sm:$0xff]
  %v42 = vld [vmem:[%s0 + $0xc8] sm:$0xff]
  %v43 = vld [vmem:[%s0 + $0xd0] sm:$0xff]
  %v44 = vld [vmem:[%s0 + $0xd8] sm:$0xff]
  %v45 = vld [vmem:[%s0 + $0xe0] sm:$0xff]
  %v46 = vld [vmem:[%s0 + $0xe8] sm:$0xff]
  %v47 = vld [vmem:[%s0 + $0xf0] sm:$0xff]
  %v48 = vld [vmem:[%s0 + $0xf8] sm:$0xff]
  %v49 = vld [vmem:[%s0 + $0x100] sm:$0xff]
  %v50 = vld [vmem:[%s0 + $0x108] sm:$0xff]
  %v51 = vld [vmem:[%s0 + $0x110] sm:$0xff]
  %v52 = vld [vmem:[%s0 + $0x118] sm:$0xff]
  %v53 = vld [vmem:[%s0 + $0x120] sm:$0xff]
  %v54 = vld [vmem:[%s0 + $0x128] sm:$0xff]
  %v55 = vld [vmem:[%s0 + $0x130] sm:$0xff]
  %v56 = vld [vmem:[%s0 + $0x138] sm:$0xff]
  %v57 = vld [vmem:[%s0 + $0x140] sm:$0xff]
  %v58 = vld [vmem:[%s0 + $0x148] sm:$0xff]
  %v59 = vld [vmem:[%s0 + $0x150] sm:$0xff]
  %v60 = vld [vmem:[%s0 + $0x158] sm:$0xff]
  %v61 = vld [vmem:[%s0 + $0x160] sm:$0xff]
  %v62 = vld [vmem:[%s0 + $0x168] sm:$0xff]
  %v63 = vld [vmem:[%s0 + $0x170] sm:$0xff]
  %v64 = vld [vmem:[%s0 + $0x178] sm:$0xff]
  %v65 = vld [vmem:[%s0 + $0x180] sm:$0xff]
  %v66 = vld [vmem:[%s0 + $0x188] sm:$0xff]
  %v67 = vld [vmem:[%s0 + $0x190] sm:$0xff]
  %v68 = vld [vmem:[%s0 + $0x198] sm:$0xff]
  %v69 = vld [vmem:[%s0 + $0x1a0] sm:$0xff]
  %v70 = vld [vmem:[%s0 + $0x1a8] sm:$0xff]
  %v71 = vld [vmem:[%s0 + $0x1b0] sm:$0xff]
  %v72 = vld [vmem:[%s0 + $0x1b8] sm:$0xff]
  %v73 = vld [vmem:[%s0 + $0x1c0] sm:$0xff]
  %v74 = vld [vmem:[%s0 + $0x1c8] sm:$0xff]
  %v75 = vld [vmem:[%s0 + $0x1d0] sm:$0xff]
  %v76 = vld [vmem:[%s0 + $0x1d8] sm:$0xff]
  %v77 = vld [vmem:[%s0 + $0x1e0] sm:$0xff]
  %v78 = vld [vmem:[%s0 + $0x1e8] sm:$0xff]
  %v79 = vld [vmem:[%s0 + $0x1f0] sm:$0xff]
  %v80 = vld [vmem:[%s0 + $0x1f8] sm:$0xff]
  %v81 = vld [vmem:[%s0 + $0x200] sm:$0xff]
  %v82 = vld [vmem:[%s0 + $0x208] sm:$0xff]
  %v83 = vld [vmem:[%s0 + $0x210] sm:$0xff]
  %v84 = vld [vmem:[%s0 + $0x218] sm:$0xff]
  %v85 = vld [vmem:[%s0 + $0x220] sm:$0xff]
  %v86 = vld [vmem:[%s0 + $0x228] sm:$0xff]
  %v87 = vld [vmem:[%s0 + $0x230] sm:$0xff]
  %v88 = vld [vmem:[%s0 + $0x238] sm:$0xff]
  %v89 = vld [vmem:[%s0 + $0x240] sm:$0xff]
  %v90 = vld [vmem:[%s0 + $0x248] sm:$0xff]
  %v91 = vld [vmem:[%s0 + $0x250] sm:$0xff]
  %v92 = vadd.f32 %v17, %v18
  %v93 = vadd.f32 %v92, %v19
  %v94 = vadd.f32 %v93, %v20
  %v95 = vadd.f32 %v94, %v21
  %v96 = vadd.f32 %v95, %v22
  %v97 = vadd.f32 %v96, %v23
  %v98 = vadd.f32 %v97, %v24
  %v99 = vadd.f32 %v98, %v25
  %v100 = vadd.f32 %v99, %v26
  %v101 = vadd.f32 %v100, %v27
  %v102 = vadd.f32 %v101, %v28
  %v103 = vadd.f32 %v102, %v29
  %v104 = vadd.f32 %v103, %v30
  %v105 = vadd.f32 %v104, %v31
  %v106 = vadd.f32 %v105, %v32
  %v107 = vadd.f32 %v106, %v33
  %v108 = vadd.f32 %v107, %v34
  %v109 = vadd.f32 %v108, %v35
  %v110 = vadd.f32 %v109, %v36
  %v111 = vadd.f32 %v110, %v37
  %v112 = vadd.f32 %v111, %v38
  %v113 = vadd.f32 %v112, %v39
  %v114 = vadd.f32 %v113, %v40
  %vm115 = vcmask 523264
  %v116 = vsel %vm115, %v41, 0.0
  %v117 = vadd.f32 %v114, %v116
  %118 = vadd.xlane.f32.xlu0 %v117
  %v119 = vpop.xlane.xlu0 %118
  %v120 = vadd.f32 %v42, %v43
  %v121 = vadd.f32 %v120, %v44
  %v122 = vadd.f32 %v121, %v45
  %v123 = vadd.f32 %v122, %v46
  %v124 = vadd.f32 %v123, %v47
  %v125 = vadd.f32 %v124, %v48
  %v126 = vadd.f32 %v125, %v49
  %v127 = vadd.f32 %v126, %v50
  %v128 = vadd.f32 %v127, %v51
  %v129 = vadd.f32 %v128, %v52
  %v130 = vadd.f32 %v129, %v53
  %v131 = vadd.f32 %v130, %v54
  %v132 = vadd.f32 %v131, %v55
  %v133 = vadd.f32 %v132, %v56
  %v134 = vadd.f32 %v133, %v57
  %v135 = vadd.f32 %v134, %v58
  %v136 = vadd.f32 %v135, %v59
  %v137 = vadd.f32 %v136, %v60
  %v138 = vadd.f32 %v137, %v61
  %v139 = vadd.f32 %v138, %v62
  %v140 = vadd.f32 %v139, %v63
  %v141 = vadd.f32 %v140, %v64
  %v142 = vadd.f32 %v141, %v65
  %v143 = vsel %vm115, %v66, 0.0
  %v144 = vadd.f32 %v142, %v143
  %145 = vadd.xlane.f32.xlu0 %v144
  %v146 = vpop.xlane.xlu0 %145
  %v147 = vadd.f32 %v67, %v68
  %v148 = vadd.f32 %v147, %v69
  %v149 = vadd.f32 %v148, %v70
  %v150 = vadd.f32 %v149, %v71
  %v151 = vadd.f32 %v150, %v72
  %v152 = vadd.f32 %v151, %v73
  %v153 = vadd.f32 %v152, %v74
  %v154 = vadd.f32 %v153, %v75
  %v155 = vadd.f32 %v154, %v76
  %v156 = vadd.f32 %v155, %v77
  %v157 = vadd.f32 %v156, %v78
  %v158 = vadd.f32 %v157, %v79
  %v159 = vadd.f32 %v158, %v80
  %v160 = vadd.f32 %v159, %v81
  %v161 = vadd.f32 %v160, %v82
  %v162 = vadd.f32 %v161, %v83
  %v163 = vadd.f32 %v162, %v84
  %v164 = vadd.f32 %v163, %v85
  %v165 = vadd.f32 %v164, %v86
  %v166 = vadd.f32 %v165, %v87
  %v167 = vadd.f32 %v166, %v88
  %v168 = vadd.f32 %v167, %v89
  %v169 = vadd.f32 %v168, %v90
  %v170 = vsel %vm115, %v91, 0.0
  %v171 = vadd.f32 %v169, %v170
  %172 = vadd.xlane.f32.xlu0 %v171
  %v173 = vpop.xlane.xlu0 %172
  %v174 = vmul.f32 %v17, %v17
  %v175 = vmul.f32 %v18, %v18
  %v176 = vmul.f32 %v19, %v19
  %v177 = vmul.f32 %v20, %v20
  %v178 = vmul.f32 %v21, %v21
  %v179 = vmul.f32 %v22, %v22
  %v180 = vmul.f32 %v23, %v23
  %v181 = vmul.f32 %v24, %v24
  %v182 = vmul.f32 %v25, %v25
  %v183 = vmul.f32 %v26, %v26
  %v184 = vmul.f32 %v27, %v27
  %v185 = vmul.f32 %v28, %v28
  %v186 = vmul.f32 %v29, %v29
  %v187 = vmul.f32 %v30, %v30
  %v188 = vmul.f32 %v31, %v31
  %v189 = vmul.f32 %v32, %v32
  %v190 = vmul.f32 %v33, %v33
  %v191 = vmul.f32 %v34, %v34
  %v192 = vmul.f32 %v35, %v35
  %v193 = vmul.f32 %v36, %v36
  %v194 = vmul.f32 %v37, %v37
  %v195 = vmul.f32 %v38, %v38
  %v196 = vmul.f32 %v39, %v39
  %v197 = vmul.f32 %v40, %v40
  %v198 = vmul.f32 %v41, %v41
  %v199 = vmul.f32 %v42, %v42
  %v200 = vmul.f32 %v43, %v43
  %v201 = vmul.f32 %v44, %v44
  %v202 = vmul.f32 %v45, %v45
  %v203 = vmul.f32 %v46, %v46
  %v204 = vmul.f32 %v47, %v47
  %v205 = vmul.f32 %v48, %v48
  %v206 = vmul.f32 %v49, %v49
  %v207 = vmul.f32 %v50, %v50
  %v208 = vmul.f32 %v51, %v51
  %v209 = vmul.f32 %v52, %v52
  %v210 = vmul.f32 %v53, %v53
  %v211 = vmul.f32 %v54, %v54
  %v212 = vmul.f32 %v55, %v55
  %v213 = vmul.f32 %v56, %v56
  %v214 = vmul.f32 %v57, %v57
  %v215 = vmul.f32 %v58, %v58
  %v216 = vmul.f32 %v59, %v59
  %v217 = vmul.f32 %v60, %v60
  %v218 = vmul.f32 %v61, %v61
  %v219 = vmul.f32 %v62, %v62
  %v220 = vmul.f32 %v63, %v63
  %v221 = vmul.f32 %v64, %v64
  %v222 = vmul.f32 %v65, %v65
  %v223 = vmul.f32 %v66, %v66
  %v224 = vmul.f32 %v67, %v67
  %v225 = vmul.f32 %v68, %v68
  %v226 = vmul.f32 %v69, %v69
  %v227 = vmul.f32 %v70, %v70
  %v228 = vmul.f32 %v71, %v71
  %v229 = vmul.f32 %v72, %v72
  %v230 = vmul.f32 %v73, %v73
  %v231 = vmul.f32 %v74, %v74
  %v232 = vmul.f32 %v75, %v75
  %v233 = vmul.f32 %v76, %v76
  %v234 = vmul.f32 %v77, %v77
  %v235 = vmul.f32 %v78, %v78
  %v236 = vmul.f32 %v79, %v79
  %v237 = vmul.f32 %v80, %v80
  %v238 = vmul.f32 %v81, %v81
  %v239 = vmul.f32 %v82, %v82
  %v240 = vmul.f32 %v83, %v83
  %v241 = vmul.f32 %v84, %v84
  %v242 = vmul.f32 %v85, %v85
  %v243 = vmul.f32 %v86, %v86
  %v244 = vmul.f32 %v87, %v87
  %v245 = vmul.f32 %v88, %v88
  %v246 = vmul.f32 %v89, %v89
  %v247 = vmul.f32 %v90, %v90
  %v248 = vmul.f32 %v91, %v91
  %v249 = vadd.f32 %v174, %v175
  %v250 = vadd.f32 %v249, %v176
  %v251 = vadd.f32 %v250, %v177
  %v252 = vadd.f32 %v251, %v178
  %v253 = vadd.f32 %v252, %v179
  %v254 = vadd.f32 %v253, %v180
  %v255 = vadd.f32 %v254, %v181
  %v256 = vadd.f32 %v255, %v182
  %v257 = vadd.f32 %v256, %v183
  %v258 = vadd.f32 %v257, %v184
  %v259 = vadd.f32 %v258, %v185
  %v260 = vadd.f32 %v259, %v186
  %v261 = vadd.f32 %v260, %v187
  %v262 = vadd.f32 %v261, %v188
  %v263 = vadd.f32 %v262, %v189
  %v264 = vadd.f32 %v263, %v190
  %v265 = vadd.f32 %v264, %v191
  %v266 = vadd.f32 %v265, %v192
  %v267 = vadd.f32 %v266, %v193
  %v268 = vadd.f32 %v267, %v194
  %v269 = vadd.f32 %v268, %v195
  %v270 = vadd.f32 %v269, %v196
  %v271 = vadd.f32 %v270, %v197
  %v272 = vsel %vm115, %v198, 0.0
  %v273 = vadd.f32 %v271, %v272
  %274 = vadd.xlane.f32.xlu0 %v273
  %v275 = vpop.xlane.xlu0 %274
  %v276 = vadd.f32 %v199, %v200
  %v277 = vadd.f32 %v276, %v201
  %v278 = vadd.f32 %v277, %v202
  %v279 = vadd.f32 %v278, %v203
  %v280 = vadd.f32 %v279, %v204
  %v281 = vadd.f32 %v280, %v205
  %v282 = vadd.f32 %v281, %v206
  %v283 = vadd.f32 %v282, %v207
  %v284 = vadd.f32 %v283, %v208
  %v285 = vadd.f32 %v284, %v209
  %v286 = vadd.f32 %v285, %v210
  %v287 = vadd.f32 %v286, %v211
  %v288 = vadd.f32 %v287, %v212
  %v289 = vadd.f32 %v288, %v213
  %v290 = vadd.f32 %v289, %v214
  %v291 = vadd.f32 %v290, %v215
  %v292 = vadd.f32 %v291, %v216
  %v293 = vadd.f32 %v292, %v217
  %v294 = vadd.f32 %v293, %v218
  %v295 = vadd.f32 %v294, %v219
  %v296 = vadd.f32 %v295, %v220
  %v297 = vadd.f32 %v296, %v221
  %v298 = vadd.f32 %v297, %v222
  %v299 = vsel %vm115, %v223, 0.0
  %v300 = vadd.f32 %v298, %v299
  %301 = vadd.xlane.f32.xlu0 %v300
  %v302 = vpop.xlane.xlu0 %301
  %v303 = vadd.f32 %v224, %v225
  %v304 = vadd.f32 %v303, %v226
  %v305 = vadd.f32 %v304, %v227
  %v306 = vadd.f32 %v305, %v228
  %v307 = vadd.f32 %v306, %v229
  %v308 = vadd.f32 %v307, %v230
  %v309 = vadd.f32 %v308, %v231
  %v310 = vadd.f32 %v309, %v232
  %v311 = vadd.f32 %v310, %v233
  %v312 = vadd.f32 %v311, %v234
  %v313 = vadd.f32 %v312, %v235
  %v314 = vadd.f32 %v313, %v236
  %v315 = vadd.f32 %v314, %v237
  %v316 = vadd.f32 %v315, %v238
  %v317 = vadd.f32 %v316, %v239
  %v318 = vadd.f32 %v317, %v240
  %v319 = vadd.f32 %v318, %v241
  %v320 = vadd.f32 %v319, %v242
  %v321 = vadd.f32 %v320, %v243
  %v322 = vadd.f32 %v321, %v244
  %v323 = vadd.f32 %v322, %v245
  %v324 = vadd.f32 %v323, %v246
  %v325 = vadd.f32 %v324, %v247
  %v326 = vsel %vm115, %v248, 0.0
  %v327 = vadd.f32 %v325, %v326
  %328 = vadd.xlane.f32.xlu0 %v327
  %v329 = vpop.xlane.xlu0 %328
  %v330 = vmul.f32 %v119, 0.00031887754
  %v331 = vmul.f32 %v146, 0.00031887754
  %v332 = vmul.f32 %v173, 0.00031887754
  %v333 = vmul.f32 %v275, 0.00031887754
  %v334 = vmul.f32 %v302, 0.00031887754
  %v335 = vmul.f32 %v329, 0.00031887754
  %v336 = vmul.f32 %v330, %v330
  %v337 = vmul.f32 %v331, %v331
  %v338 = vmul.f32 %v332, %v332
  %v339 = vsub.f32 %v333, %v336
  %v340 = vsub.f32 %v334, %v337
  %v341 = vsub.f32 %v335, %v338
  %v342 = vadd.f32 %v339, 1e-05
  %v343 = vadd.f32 %v340, 1e-05
  %v344 = vadd.f32 %v341, 1e-05
  %v345 = vrsqrt.pop %v342
  %v346 = vrsqrt.pop %v343
  %v347 = vrsqrt.pop %v344
  %v348 = vld [vmem:[%s2] sm:$0xff]
  %v349 = vld [vmem:[%s2 + $0x8] sm:$0xff]
  %v350 = vld [vmem:[%s2 + $0x10] sm:$0xff]
  %v351 = vmul.f32 %v348, %v345
  %v352 = vmul.f32 %v349, %v346
  %v353 = vmul.f32 %v350, %v347
  %v354 = vld [vmem:[%s3] sm:$0xff]
  %v355 = vld [vmem:[%s3 + $0x8] sm:$0xff]
  %v356 = vld [vmem:[%s3 + $0x10] sm:$0xff]
  %v357 = vmul.f32 %v330, %v351
  %v358 = vmul.f32 %v331, %v352
  %v359 = vmul.f32 %v332, %v353
  %v360 = vsub.f32 %v354, %v357
  %v361 = vsub.f32 %v355, %v358
  %v362 = vsub.f32 %v356, %v359
  %v363 = vld [vmem:[%s1] sm:$0xff]
  %v364 = vld [vmem:[%s1 + $0x8] sm:$0xff]
  %v365 = vld [vmem:[%s1 + $0x10] sm:$0xff]
  %v366 = vld [vmem:[%s1 + $0x18] sm:$0xff]
  %v367 = vld [vmem:[%s1 + $0x20] sm:$0xff]
  %v368 = vld [vmem:[%s1 + $0x28] sm:$0xff]
  %v369 = vld [vmem:[%s1 + $0x30] sm:$0xff]
  %v370 = vld [vmem:[%s1 + $0x38] sm:$0xff]
  %v371 = vld [vmem:[%s1 + $0x40] sm:$0xff]
  %v372 = vld [vmem:[%s1 + $0x48] sm:$0xff]
  %v373 = vld [vmem:[%s1 + $0x50] sm:$0xff]
  %v374 = vld [vmem:[%s1 + $0x58] sm:$0xff]
  %v375 = vld [vmem:[%s1 + $0x60] sm:$0xff]
  %v376 = vld [vmem:[%s1 + $0x68] sm:$0xff]
  %v377 = vld [vmem:[%s1 + $0x70] sm:$0xff]
  %v378 = vld [vmem:[%s1 + $0x78] sm:$0xff]
  %v379 = vld [vmem:[%s1 + $0x80] sm:$0xff]
  %v380 = vld [vmem:[%s1 + $0x88] sm:$0xff]
  %v381 = vld [vmem:[%s1 + $0x90] sm:$0xff]
  %v382 = vld [vmem:[%s1 + $0x98] sm:$0xff]
  %v383 = vld [vmem:[%s1 + $0xa0] sm:$0xff]
  %v384 = vld [vmem:[%s1 + $0xa8] sm:$0xff]
  %v385 = vld [vmem:[%s1 + $0xb0] sm:$0xff]
  %v386 = vld [vmem:[%s1 + $0xb8] sm:$0xff]
  %v387 = vld [vmem:[%s1 + $0xc0] sm:$0xff]
  %v388 = vld [vmem:[%s1 + $0xc8] sm:$0xff]
  %v389 = vld [vmem:[%s1 + $0xd0] sm:$0xff]
  %v390 = vld [vmem:[%s1 + $0xd8] sm:$0xff]
  %v391 = vld [vmem:[%s1 + $0xe0] sm:$0xff]
  %v392 = vld [vmem:[%s1 + $0xe8] sm:$0xff]
  %v393 = vld [vmem:[%s1 + $0xf0] sm:$0xff]
  %v394 = vld [vmem:[%s1 + $0xf8] sm:$0xff]
  %v395 = vld [vmem:[%s1 + $0x100] sm:$0xff]
  %v396 = vld [vmem:[%s1 + $0x108] sm:$0xff]
  %v397 = vld [vmem:[%s1 + $0x110] sm:$0xff]
  %v398 = vld [vmem:[%s1 + $0x118] sm:$0xff]
  %v399 = vld [vmem:[%s1 + $0x120] sm:$0xff]
  %v400 = vld [vmem:[%s1 + $0x128] sm:$0xff]
  %v401 = vld [vmem:[%s1 + $0x130] sm:$0xff]
  %v402 = vld [vmem:[%s1 + $0x138] sm:$0xff]
  %v403 = vld [vmem:[%s1 + $0x140] sm:$0xff]
  %v404 = vld [vmem:[%s1 + $0x148] sm:$0xff]
  %v405 = vld [vmem:[%s1 + $0x150] sm:$0xff]
  %v406 = vld [vmem:[%s1 + $0x158] sm:$0xff]
  %v407 = vld [vmem:[%s1 + $0x160] sm:$0xff]
  %v408 = vld [vmem:[%s1 + $0x168] sm:$0xff]
  %v409 = vld [vmem:[%s1 + $0x170] sm:$0xff]
  %v410 = vld [vmem:[%s1 + $0x178] sm:$0xff]
  %v411 = vld [vmem:[%s1 + $0x180] sm:$0xff]
  %v412 = vld [vmem:[%s1 + $0x188] sm:$0xff]
  %v413 = vld [vmem:[%s1 + $0x190] sm:$0xff]
  %v414 = vld [vmem:[%s1 + $0x198] sm:$0xff]
  %v415 = vld [vmem:[%s1 + $0x1a0] sm:$0xff]
  %v416 = vld [vmem:[%s1 + $0x1a8] sm:$0xff]
  %v417 = vld [vmem:[%s1 + $0x1b0] sm:$0xff]
  %v418 = vld [vmem:[%s1 + $0x1b8] sm:$0xff]
  %v419 = vld [vmem:[%s1 + $0x1c0] sm:$0xff]
  %v420 = vld [vmem:[%s1 + $0x1c8] sm:$0xff]
  %v421 = vld [vmem:[%s1 + $0x1d0] sm:$0xff]
  %v422 = vld [vmem:[%s1 + $0x1d8] sm:$0xff]
  %v423 = vld [vmem:[%s1 + $0x1e0] sm:$0xff]
  %v424 = vld [vmem:[%s1 + $0x1e8] sm:$0xff]
  %v425 = vld [vmem:[%s1 + $0x1f0] sm:$0xff]
  %v426 = vld [vmem:[%s1 + $0x1f8] sm:$0xff]
  %v427 = vld [vmem:[%s1 + $0x200] sm:$0xff]
  %v428 = vld [vmem:[%s1 + $0x208] sm:$0xff]
  %v429 = vld [vmem:[%s1 + $0x210] sm:$0xff]
  %v430 = vld [vmem:[%s1 + $0x218] sm:$0xff]
  %v431 = vld [vmem:[%s1 + $0x220] sm:$0xff]
  %v432 = vld [vmem:[%s1 + $0x228] sm:$0xff]
  %v433 = vld [vmem:[%s1 + $0x230] sm:$0xff]
  %v434 = vld [vmem:[%s1 + $0x238] sm:$0xff]
  %v435 = vld [vmem:[%s1 + $0x240] sm:$0xff]
  %v436 = vld [vmem:[%s1 + $0x248] sm:$0xff]
  %v437 = vld [vmem:[%s1 + $0x250] sm:$0xff]
  %439 = vset.pattern.permute.xlu0 0
  %440 = vperm.xlu0 %439, %v351
  %v441 = vpop.permute.xlu0 %440
  %444 = vset.pattern.permute.xlu0 0
  %445 = vperm.xlu0 %444, %v352
  %v446 = vpop.permute.xlu0 %445
  %449 = vset.pattern.permute.xlu0 0
  %450 = vperm.xlu0 %449, %v353
  %v451 = vpop.permute.xlu0 %450
  %v453 = vmul.f32 %v17, %v441
  %v454 = vmul.f32 %v18, %v441
  %v455 = vmul.f32 %v19, %v441
  %v456 = vmul.f32 %v20, %v441
  %v457 = vmul.f32 %v21, %v441
  %v458 = vmul.f32 %v22, %v441
  %v459 = vmul.f32 %v23, %v441
  %v460 = vmul.f32 %v24, %v441
  %v461 = vmul.f32 %v25, %v441
  %v462 = vmul.f32 %v26, %v441
  %v463 = vmul.f32 %v27, %v441
  %v464 = vmul.f32 %v28, %v441
  %v465 = vmul.f32 %v29, %v441
  %v466 = vmul.f32 %v30, %v441
  %v467 = vmul.f32 %v31, %v441
  %v468 = vmul.f32 %v32, %v441
  %v469 = vmul.f32 %v33, %v441
  %v470 = vmul.f32 %v34, %v441
  %v471 = vmul.f32 %v35, %v441
  %v472 = vmul.f32 %v36, %v441
  %v473 = vmul.f32 %v37, %v441
  %v474 = vmul.f32 %v38, %v441
  %v475 = vmul.f32 %v39, %v441
  %v476 = vmul.f32 %v40, %v441
  %v477 = vmul.f32 %v41, %v441
  %v478 = vmul.f32 %v42, %v446
  %v479 = vmul.f32 %v43, %v446
  %v480 = vmul.f32 %v44, %v446
  %v481 = vmul.f32 %v45, %v446
  %v482 = vmul.f32 %v46, %v446
  %v483 = vmul.f32 %v47, %v446
  %v484 = vmul.f32 %v48, %v446
  %v485 = vmul.f32 %v49, %v446
  %v486 = vmul.f32 %v50, %v446
  %v487 = vmul.f32 %v51, %v446
  %v488 = vmul.f32 %v52, %v446
  %v489 = vmul.f32 %v53, %v446
  %v490 = vmul.f32 %v54, %v446
  %v491 = vmul.f32 %v55, %v446
  %v492 = vmul.f32 %v56, %v446
  %v493 = vmul.f32 %v57, %v446
  %v494 = vmul.f32 %v58, %v446
  %v495 = vmul.f32 %v59, %v446
  %v496 = vmul.f32 %v60, %v446
  %v497 = vmul.f32 %v61, %v446
  %v498 = vmul.f32 %v62, %v446
  %v499 = vmul.f32 %v63, %v446
  %v500 = vmul.f32 %v64, %v446
  %v501 = vmul.f32 %v65, %v446
  %v502 = vmul.f32 %v66, %v446
  %v503 = vmul.f32 %v67, %v451
  %v504 = vmul.f32 %v68, %v451
  %v505 = vmul.f32 %v69, %v451
  %v506 = vmul.f32 %v70, %v451
  %v507 = vmul.f32 %v71, %v451
  %v508 = vmul.f32 %v72, %v451
  %v509 = vmul.f32 %v73, %v451
  %v510 = vmul.f32 %v74, %v451
  %v511 = vmul.f32 %v75, %v451
  %v512 = vmul.f32 %v76, %v451
  %v513 = vmul.f32 %v77, %v451
  %v514 = vmul.f32 %v78, %v451
  %v515 = vmul.f32 %v79, %v451
  %v516 = vmul.f32 %v80, %v451
  %v517 = vmul.f32 %v81, %v451
  %v518 = vmul.f32 %v82, %v451
  %v519 = vmul.f32 %v83, %v451
  %v520 = vmul.f32 %v84, %v451
  %v521 = vmul.f32 %v85, %v451
  %v522 = vmul.f32 %v86, %v451
  %v523 = vmul.f32 %v87, %v451
  %v524 = vmul.f32 %v88, %v451
  %v525 = vmul.f32 %v89, %v451
  %v526 = vmul.f32 %v90, %v451
  %v527 = vmul.f32 %v91, %v451
  %v528 = vadd.f32 %v363, %v453
  %v529 = vadd.f32 %v364, %v454
  %v530 = vadd.f32 %v365, %v455
  %v531 = vadd.f32 %v366, %v456
  %v532 = vadd.f32 %v367, %v457
  %v533 = vadd.f32 %v368, %v458
  %v534 = vadd.f32 %v369, %v459
  %v535 = vadd.f32 %v370, %v460
  %v536 = vadd.f32 %v371, %v461
  %v537 = vadd.f32 %v372, %v462
  %v538 = vadd.f32 %v373, %v463
  %v539 = vadd.f32 %v374, %v464
  %v540 = vadd.f32 %v375, %v465
  %v541 = vadd.f32 %v376, %v466
  %v542 = vadd.f32 %v377, %v467
  %v543 = vadd.f32 %v378, %v468
  %v544 = vadd.f32 %v379, %v469
  %v545 = vadd.f32 %v380, %v470
  %v546 = vadd.f32 %v381, %v471
  %v547 = vadd.f32 %v382, %v472
  %v548 = vadd.f32 %v383, %v473
  %v549 = vadd.f32 %v384, %v474
  %v550 = vadd.f32 %v385, %v475
  %v551 = vadd.f32 %v386, %v476
  %v552 = vadd.f32 %v387, %v477
  %v553 = vadd.f32 %v388, %v478
  %v554 = vadd.f32 %v389, %v479
  %v555 = vadd.f32 %v390, %v480
  %v556 = vadd.f32 %v391, %v481
  %v557 = vadd.f32 %v392, %v482
  %v558 = vadd.f32 %v393, %v483
  %v559 = vadd.f32 %v394, %v484
  %v560 = vadd.f32 %v395, %v485
  %v561 = vadd.f32 %v396, %v486
  %v562 = vadd.f32 %v397, %v487
  %v563 = vadd.f32 %v398, %v488
  %v564 = vadd.f32 %v399, %v489
  %v565 = vadd.f32 %v400, %v490
  %v566 = vadd.f32 %v401, %v491
  %v567 = vadd.f32 %v402, %v492
  %v568 = vadd.f32 %v403, %v493
  %v569 = vadd.f32 %v404, %v494
  %v570 = vadd.f32 %v405, %v495
  %v571 = vadd.f32 %v406, %v496
  %v572 = vadd.f32 %v407, %v497
  %v573 = vadd.f32 %v408, %v498
  %v574 = vadd.f32 %v409, %v499
  %v575 = vadd.f32 %v410, %v500
  %v576 = vadd.f32 %v411, %v501
  %v577 = vadd.f32 %v412, %v502
  %v578 = vadd.f32 %v413, %v503
  %v579 = vadd.f32 %v414, %v504
  %v580 = vadd.f32 %v415, %v505
  %v581 = vadd.f32 %v416, %v506
  %v582 = vadd.f32 %v417, %v507
  %v583 = vadd.f32 %v418, %v508
  %v584 = vadd.f32 %v419, %v509
  %v585 = vadd.f32 %v420, %v510
  %v586 = vadd.f32 %v421, %v511
  %v587 = vadd.f32 %v422, %v512
  %v588 = vadd.f32 %v423, %v513
  %v589 = vadd.f32 %v424, %v514
  %v590 = vadd.f32 %v425, %v515
  %v591 = vadd.f32 %v426, %v516
  %v592 = vadd.f32 %v427, %v517
  %v593 = vadd.f32 %v428, %v518
  %v594 = vadd.f32 %v429, %v519
  %v595 = vadd.f32 %v430, %v520
  %v596 = vadd.f32 %v431, %v521
  %v597 = vadd.f32 %v432, %v522
  %v598 = vadd.f32 %v433, %v523
  %v599 = vadd.f32 %v434, %v524
  %v600 = vadd.f32 %v435, %v525
  %v601 = vadd.f32 %v436, %v526
  %v602 = vadd.f32 %v437, %v527
  %604 = vset.pattern.permute.xlu0 0
  %605 = vperm.xlu0 %604, %v360
  %v606 = vpop.permute.xlu0 %605
  %609 = vset.pattern.permute.xlu0 0
  %610 = vperm.xlu0 %609, %v361
  %v611 = vpop.permute.xlu0 %610
  %614 = vset.pattern.permute.xlu0 0
  %615 = vperm.xlu0 %614, %v362
  %v616 = vpop.permute.xlu0 %615
  %v618 = vadd.f32 %v528, %v606
  %v619 = vadd.f32 %v529, %v606
  %v620 = vadd.f32 %v530, %v606
  %v621 = vadd.f32 %v531, %v606
  %v622 = vadd.f32 %v532, %v606
  %v623 = vadd.f32 %v533, %v606
  %v624 = vadd.f32 %v534, %v606
  %v625 = vadd.f32 %v535, %v606
  %v626 = vadd.f32 %v536, %v606
  %v627 = vadd.f32 %v537, %v606
  %v628 = vadd.f32 %v538, %v606
  %v629 = vadd.f32 %v539, %v606
  %v630 = vadd.f32 %v540, %v606
  %v631 = vadd.f32 %v541, %v606
  %v632 = vadd.f32 %v542, %v606
  %v633 = vadd.f32 %v543, %v606
  %v634 = vadd.f32 %v544, %v606
  %v635 = vadd.f32 %v545, %v606
  %v636 = vadd.f32 %v546, %v606
  %v637 = vadd.f32 %v547, %v606
  %v638 = vadd.f32 %v548, %v606
  %v639 = vadd.f32 %v549, %v606
  %v640 = vadd.f32 %v550, %v606
  %v641 = vadd.f32 %v551, %v606
  %v642 = vadd.f32 %v552, %v606
  %v643 = vadd.f32 %v553, %v611
  %v644 = vadd.f32 %v554, %v611
  %v645 = vadd.f32 %v555, %v611
  %v646 = vadd.f32 %v556, %v611
  %v647 = vadd.f32 %v557, %v611
  %v648 = vadd.f32 %v558, %v611
  %v649 = vadd.f32 %v559, %v611
  %v650 = vadd.f32 %v560, %v611
  %v651 = vadd.f32 %v561, %v611
  %v652 = vadd.f32 %v562, %v611
  %v653 = vadd.f32 %v563, %v611
  %v654 = vadd.f32 %v564, %v611
  %v655 = vadd.f32 %v565, %v611
  %v656 = vadd.f32 %v566, %v611
  %v657 = vadd.f32 %v567, %v611
  %v658 = vadd.f32 %v568, %v611
  %v659 = vadd.f32 %v569, %v611
  %v660 = vadd.f32 %v570, %v611
  %v661 = vadd.f32 %v571, %v611
  %v662 = vadd.f32 %v572, %v611
  %v663 = vadd.f32 %v573, %v611
  %v664 = vadd.f32 %v574, %v611
  %v665 = vadd.f32 %v575, %v611
  %v666 = vadd.f32 %v576, %v611
  %v667 = vadd.f32 %v577, %v611
  %v668 = vadd.f32 %v578, %v616
  %v669 = vadd.f32 %v579, %v616
  %v670 = vadd.f32 %v580, %v616
  %v671 = vadd.f32 %v581, %v616
  %v672 = vadd.f32 %v582, %v616
  %v673 = vadd.f32 %v583, %v616
  %v674 = vadd.f32 %v584, %v616
  %v675 = vadd.f32 %v585, %v616
  %v676 = vadd.f32 %v586, %v616
  %v677 = vadd.f32 %v587, %v616
  %v678 = vadd.f32 %v588, %v616
  %v679 = vadd.f32 %v589, %v616
  %v680 = vadd.f32 %v590, %v616
  %v681 = vadd.f32 %v591, %v616
  %v682 = vadd.f32 %v592, %v616
  %v683 = vadd.f32 %v593, %v616
  %v684 = vadd.f32 %v594, %v616
  %v685 = vadd.f32 %v595, %v616
  %v686 = vadd.f32 %v596, %v616
  %v687 = vadd.f32 %v597, %v616
  %v688 = vadd.f32 %v598, %v616
  %v689 = vadd.f32 %v599, %v616
  %v690 = vadd.f32 %v600, %v616
  %v691 = vadd.f32 %v601, %v616
  %v692 = vadd.f32 %v602, %v616
  %693 = vst [vmem:[%s4] sm:$0xff] %v618
  %694 = vst [vmem:[%s4 + $0x8] sm:$0xff] %v619
  %695 = vst [vmem:[%s4 + $0x10] sm:$0xff] %v620
  %696 = vst [vmem:[%s4 + $0x18] sm:$0xff] %v621
  %697 = vst [vmem:[%s4 + $0x20] sm:$0xff] %v622
  %698 = vst [vmem:[%s4 + $0x28] sm:$0xff] %v623
  %699 = vst [vmem:[%s4 + $0x30] sm:$0xff] %v624
  %700 = vst [vmem:[%s4 + $0x38] sm:$0xff] %v625
  %701 = vst [vmem:[%s4 + $0x40] sm:$0xff] %v626
  %702 = vst [vmem:[%s4 + $0x48] sm:$0xff] %v627
  %703 = vst [vmem:[%s4 + $0x50] sm:$0xff] %v628
  %704 = vst [vmem:[%s4 + $0x58] sm:$0xff] %v629
  %705 = vst [vmem:[%s4 + $0x60] sm:$0xff] %v630
  %706 = vst [vmem:[%s4 + $0x68] sm:$0xff] %v631
  %707 = vst [vmem:[%s4 + $0x70] sm:$0xff] %v632
  %708 = vst [vmem:[%s4 + $0x78] sm:$0xff] %v633
  %709 = vst [vmem:[%s4 + $0x80] sm:$0xff] %v634
  %710 = vst [vmem:[%s4 + $0x88] sm:$0xff] %v635
  %711 = vst [vmem:[%s4 + $0x90] sm:$0xff] %v636
  %712 = vst [vmem:[%s4 + $0x98] sm:$0xff] %v637
  %713 = vst [vmem:[%s4 + $0xa0] sm:$0xff] %v638
  %714 = vst [vmem:[%s4 + $0xa8] sm:$0xff] %v639
  %715 = vst [vmem:[%s4 + $0xb0] sm:$0xff] %v640
  %716 = vst [vmem:[%s4 + $0xb8] sm:$0xff] %v641
  %717 = vst.msk [vmem:[%s4 + $0xc0] sm:$0xff] %vm115, %v642
  %718 = vst [vmem:[%s4 + $0xc8] sm:$0xff] %v643
  %719 = vst [vmem:[%s4 + $0xd0] sm:$0xff] %v644
  %720 = vst [vmem:[%s4 + $0xd8] sm:$0xff] %v645
  %721 = vst [vmem:[%s4 + $0xe0] sm:$0xff] %v646
  %722 = vst [vmem:[%s4 + $0xe8] sm:$0xff] %v647
  %723 = vst [vmem:[%s4 + $0xf0] sm:$0xff] %v648
  %724 = vst [vmem:[%s4 + $0xf8] sm:$0xff] %v649
  %725 = vst [vmem:[%s4 + $0x100] sm:$0xff] %v650
  %726 = vst [vmem:[%s4 + $0x108] sm:$0xff] %v651
  %727 = vst [vmem:[%s4 + $0x110] sm:$0xff] %v652
  %728 = vst [vmem:[%s4 + $0x118] sm:$0xff] %v653
  %729 = vst [vmem:[%s4 + $0x120] sm:$0xff] %v654
  %730 = vst [vmem:[%s4 + $0x128] sm:$0xff] %v655
  %731 = vst [vmem:[%s4 + $0x130] sm:$0xff] %v656
  %732 = vst [vmem:[%s4 + $0x138] sm:$0xff] %v657
  %733 = vst [vmem:[%s4 + $0x140] sm:$0xff] %v658
  %734 = vst [vmem:[%s4 + $0x148] sm:$0xff] %v659
  %735 = vst [vmem:[%s4 + $0x150] sm:$0xff] %v660
  %736 = vst [vmem:[%s4 + $0x158] sm:$0xff] %v661
  %737 = vst [vmem:[%s4 + $0x160] sm:$0xff] %v662
  %738 = vst [vmem:[%s4 + $0x168] sm:$0xff] %v663
  %739 = vst [vmem:[%s4 + $0x170] sm:$0xff] %v664
  %740 = vst [vmem:[%s4 + $0x178] sm:$0xff] %v665
  %741 = vst [vmem:[%s4 + $0x180] sm:$0xff] %v666
  %742 = vst.msk [vmem:[%s4 + $0x188] sm:$0xff] %vm115, %v667
  %743 = vst [vmem:[%s4 + $0x190] sm:$0xff] %v668
  %744 = vst [vmem:[%s4 + $0x198] sm:$0xff] %v669
  %745 = vst [vmem:[%s4 + $0x1a0] sm:$0xff] %v670
  %746 = vst [vmem:[%s4 + $0x1a8] sm:$0xff] %v671
  %747 = vst [vmem:[%s4 + $0x1b0] sm:$0xff] %v672
  %748 = vst [vmem:[%s4 + $0x1b8] sm:$0xff] %v673
  %749 = vst [vmem:[%s4 + $0x1c0] sm:$0xff] %v674
  %750 = vst [vmem:[%s4 + $0x1c8] sm:$0xff] %v675
  %751 = vst [vmem:[%s4 + $0x1d0] sm:$0xff] %v676
  %752 = vst [vmem:[%s4 + $0x1d8] sm:$0xff] %v677
  %753 = vst [vmem:[%s4 + $0x1e0] sm:$0xff] %v678
  %754 = vst [vmem:[%s4 + $0x1e8] sm:$0xff] %v679
  %755 = vst [vmem:[%s4 + $0x1f0] sm:$0xff] %v680
  %756 = vst [vmem:[%s4 + $0x1f8] sm:$0xff] %v681
  %757 = vst [vmem:[%s4 + $0x200] sm:$0xff] %v682
  %758 = vst [vmem:[%s4 + $0x208] sm:$0xff] %v683
  %759 = vst [vmem:[%s4 + $0x210] sm:$0xff] %v684
  %760 = vst [vmem:[%s4 + $0x218] sm:$0xff] %v685
  %761 = vst [vmem:[%s4 + $0x220] sm:$0xff] %v686
  %762 = vst [vmem:[%s4 + $0x228] sm:$0xff] %v687
  %763 = vst [vmem:[%s4 + $0x230] sm:$0xff] %v688
  %764 = vst [vmem:[%s4 + $0x238] sm:$0xff] %v689
  %765 = vst [vmem:[%s4 + $0x240] sm:$0xff] %v690
  %766 = vst [vmem:[%s4 + $0x248] sm:$0xff] %v691
  %767 = vst.msk [vmem:[%s4 + $0x250] sm:$0xff] %vm115, %v692
  // Predicated region
  $region18: #{batchnorm_add.1} parent=0 // pred_check
    _
  $region19: #{batchnorm_add.1} parent=0 // pred_check_branch
    %769 = sbr.rel (0) target = $region21
  $region20: #{batchnorm_add.1} parent=0 // pred_region
    _
  $region21: #{batchnorm_add.1} parent=0 // pred_fallthru
    _
  // Predicated region
  $region22: #{batchnorm_add.1} parent=0 // pred_check
    _
  $region23: #{batchnorm_add.1} parent=0 // pred_check_branch
    %771 = sbr.rel (0) target = $region25
  $region24: #{batchnorm_add.1} parent=0 // pred_region
    _
  $region25: #{batchnorm_add.1} parent=0 // pred_fallthru
    _

</llo_original>
